<compile_context>
chip_gen: v5e
topology: v5e:2x2
jax: 0.10.0
libtpu: 0.0.40
codegen_flags: <defaults>
</compile_context>

<pallas_src>
import functools

import jax
import jax.numpy as jnp
from jax.experimental import pallas as pl
from jax.experimental.pallas import tpu as pltpu


def _round_up(x, m):
    return ((x + m - 1) // m) * m


def _pad2(x, target):
    """Zero-pad a 2-D array up to `target` shape."""
    return jnp.pad(x, ((0, target[0] - x.shape[0]), (0, target[1] - x.shape[1])))


def _default_tiles():
    """Generation-aware default (tile_d, tile_s)."""
    try:
        kind = jax.devices()[0].device_kind.lower()
    except Exception:  # pragma: no cover - defensive
        kind = ""
    if "v7" in kind:
        # 3.2 TB/s HBM: each grid step should move >= ~1-2 MB of adjacency, so
        # use a larger streamed (contraction) tile; still tiny vs 64 MiB VMEM.
        return 512, 1024
    return 512, 512


def _pick_tile(n, tile_default, *, keep_two_tiles=False):
    """Largest 128-multiple tile <= tile_default covering n (after padding)."""
    n128 = _round_up(max(n, 1), 128)
    t = min(tile_default, n128)
    if keep_two_tiles and n128 >= 256:
        # keep >= 2 tiles on the "parallel" d axis so both v7x TensorCores get
        # work (no effect on single-TC v5e/v6e).
        t = min(t, (n128 // 2) // 128 * 128)
    return max(t, 128)


# --------------------------------------------------------------------------
# Kernel 1: per-relation feature transform  Wh[r] = xs[src(r)] @ W[r] + b[r]
# --------------------------------------------------------------------------
def _wh_kernel(sel_ref, xs_ref, w_ref, b_ref, o_ref):
    del sel_ref  # only used inside the BlockSpec index_maps
    o_ref[0] = (
        jnp.dot(xs_ref[0], w_ref[0], preferred_element_type=jnp.float32)
        + b_ref[0]
    ).astype(o_ref.dtype)


@functools.partial(jax.jit, static_argnames=("tile_s",))
def compute_wh(srcsel, xs_bank, w_stack, b_stack, *, tile_s):
    """srcsel:(R,) int32 relation->src-type; xs_bank:(T,Ns,F_in) bf16;
    w_stack:(R,F_in,F_out) bf16; b_stack:(R,1,F_out) f32 -> (R,Ns,F_out) bf16."""
    R, F_in, F_out = w_stack.shape
    _, Ns, _ = xs_bank.shape
    n_s = Ns // tile_s
    return pl.pallas_call(
        _wh_kernel,
        out_shape=jax.ShapeDtypeStruct((R, Ns, F_out), jnp.bfloat16),
        grid_spec=pltpu.PrefetchScalarGridSpec(
            num_scalar_prefetch=1,
            # R innermost + relations pre-sorted by source ntype: the xs block
            # index is unchanged across same-src relations -> Pallas skips the
            # feature re-DMA; only the small W/b tiles are refetched.
            grid=(n_s, R),
            in_specs=[
                pl.BlockSpec((1, tile_s, F_in), lambda s, r, sel: (sel[r], s, 0)),
                pl.BlockSpec((1, F_in, F_out), lambda s, r, sel: (r, 0, 0)),
                pl.BlockSpec((1, 1, F_out), lambda s, r, sel: (r, 0, 0)),
            ],
            out_specs=pl.BlockSpec((1, tile_s, F_out), lambda s, r, sel: (r, s, 0)),
        ),
        compiler_params=pltpu.CompilerParams(
            dimension_semantics=("parallel", "parallel")),
    )(srcsel, xs_bank, w_stack, b_stack)


# --------------------------------------------------------------------------
# Kernel 2: tiled aggregation for one destination node type.
#   grid = (d_tiles, K, s_tiles); output (Td, F_out) resident across (K, s).
#   Self term feat[dst] @ W0 + b0 initializes the f32 accumulator at (0, 0).
# --------------------------------------------------------------------------
def _agg_kernel_resident(relsel_ref, aw_ref, invdeg_ref, wh_ref, xd_ref, w0_ref,
                         b0_ref, o_ref, *, tile_s):
    """wh_ref holds ALL relations' Wh, VMEM-resident (constant block index)."""
    k = pl.program_id(1)
    s = pl.program_id(2)

    @pl.when((k == 0) & (s == 0))
    def _():
        o_ref[...] = (
            jnp.dot(xd_ref[...], w0_ref[...], preferred_element_type=jnp.float32)
            + b0_ref[...]
        )

    r = relsel_ref[k]
    start = pl.multiple_of(s * tile_s, tile_s)
    wh_blk = wh_ref[r, pl.ds(start, tile_s), :]
    # mean normalization applied to the (tile_d, F_out) f32 dot result instead
    # of the (tile_d, tile_s) adjacency stream: less VPU work, more accurate.
    o_ref[...] += invdeg_ref[0] * jnp.dot(
        aw_ref[0], wh_blk, preferred_element_type=jnp.float32)


def _agg_kernel_tiled(relsel_ref, aw_ref, invdeg_ref, wh_ref, xd_ref, w0_ref,
                      b0_ref, o_ref):
    """Fallback when wh_all is too large to keep resident: wh streamed per tile
    (re-reads amortized by the large tile_d)."""
    del relsel_ref  # only used inside the BlockSpec index_maps
    k = pl.program_id(1)
    s = pl.program_id(2)

    @pl.when((k == 0) & (s == 0))
    def _():
        o_ref[...] = (
            jnp.dot(xd_ref[...], w0_ref[...], preferred_element_type=jnp.float32)
            + b0_ref[...]
        )

    o_ref[...] += invdeg_ref[0] * jnp.dot(
        aw_ref[0], wh_ref[0], preferred_element_type=jnp.float32)


@functools.partial(jax.jit, static_argnames=("tile_d", "tile_s", "wh_resident"))
def aggregate_dst(relsel, aw_stack, invdeg_stack, wh_all, xd, w0, b0, *,
                  tile_d, tile_s, wh_resident):
    """relsel:(K,) int32 into wh_all's relation axis; aw_stack:(K,Nd,Ns) bf16;
    invdeg_stack:(K,Nd,1) f32; wh_all:(R,Ns,F_out) bf16; xd:(Nd,F_in) bf16;
    w0:(F_in,F_out) bf16; b0:(1,F_out) f32 -> (Nd,F_out) f32."""
    K, Nd, Ns = aw_stack.shape
    R, _, F_out = wh_all.shape
    F_in = xd.shape[1]
    n_d = Nd // tile_d
    n_s = Ns // tile_s

    if wh_resident:
        kernel = functools.partial(_agg_kernel_resident, tile_s=tile_s)
        # full-array block, constant index -> fetched once, stays in VMEM.
        wh_spec = pl.BlockSpec((R, Ns, F_out), lambda d, k, s, rs: (0, 0, 0))
        wh_vmem = 2 * R * Ns * F_out * 2
    else:
        kernel = _agg_kernel_tiled
        wh_spec = pl.BlockSpec((1, tile_s, F_out), lambda d, k, s, rs: (rs[k], s, 0))
        wh_vmem = 2 * tile_s * F_out * 2

    # rough double-buffered VMEM footprint; raise the scoped limit only when
    # the generation defaults (16 MiB v5e / 32 MiB v6e,v7x) might be exceeded.
    est = (2 * (tile_d * tile_s * 2 + tile_d * 4)            # aw + invdeg
           + wh_vmem
           + 2 * (tile_d * F_in * 2 + F_in * F_out * 2 + F_out * 4)  # xd,w0,b0
           + 2 * tile_d * F_out * 4)                         # output block
    cp_kwargs = {"dimension_semantics": ("parallel", "arbitrary", "arbitrary")}
    if est > 12 * 2**20:
        cp_kwargs["vmem_limit_bytes"] = int(min(est * 3 // 2, 64 * 2**20))

    return pl.pallas_call(
        kernel,
        out_shape=jax.ShapeDtypeStruct((Nd, F_out), jnp.float32),
        grid_spec=pltpu.PrefetchScalarGridSpec(
            num_scalar_prefetch=1,
            grid=(n_d, K, n_s),
            in_specs=[
                pl.BlockSpec((1, tile_d, tile_s), lambda d, k, s, rs: (k, d, s)),
                pl.BlockSpec((1, tile_d, 1), lambda d, k, s, rs: (k, d, 0)),
                wh_spec,
                # k/s-invariant inputs; pipeline_mode=pl.Buffered(...) sweeps
                # are a profile-dependent follow-up on real graphs.
                pl.BlockSpec((tile_d, F_in), lambda d, k, s, rs: (d, 0)),
                pl.BlockSpec((F_in, F_out), lambda d, k, s, rs: (0, 0)),
                pl.BlockSpec((1, F_out), lambda d, k, s, rs: (0, 0)),
            ],
            out_specs=pl.BlockSpec((tile_d, F_out), lambda d, k, s, rs: (d, 0)),
        ),
        compiler_params=pltpu.CompilerParams(**cp_kwargs),
    )(relsel, aw_stack, invdeg_stack, wh_all, xd, w0, b0)


# --------------------------------------------------------------------------
# HeteroRGCNLayer (Pallas-backed)
# --------------------------------------------------------------------------
class HeteroRGCNLayerPallas:
    def __init__(self, in_size, out_size, etypes, key):
        self.in_size, self.out_size = in_size, out_size
        k0, kb0, *ks = jax.random.split(key, 2 + 2 * len(etypes))
        # nn.Linear(in, out): weight (out, in), bias (out,). Stored transposed.
        self.w0 = 0.1 * jax.random.normal(k0, (in_size, out_size), jnp.float32)
        self.b0 = 0.1 * jax.random.normal(kb0, (1, out_size), jnp.float32)
        self.w, self.b = {}, {}
        for i, e in enumerate(etypes):
            self.w[e] = 0.1 * jax.random.normal(ks[2 * i], (in_size, out_size),
                                                jnp.float32)
            self.b[e] = 0.1 * jax.random.normal(ks[2 * i + 1], (1, out_size),
                                                jnp.float32)

    def __call__(self, graph, feat_dict, eweight_dict=None, *,
                 tile_d=None, tile_s=None):
        """graph: {'ntypes', 'num_nodes': {nt: N}, 'canonical_etypes',
                   'adj': {(s,e,d): (N_d, N_s) 0/1 mask}}"""
        ntypes = graph["ntypes"]
        cets = graph["canonical_etypes"]
        num_nodes = graph["num_nodes"]

        td_def, ts_def = _default_tiles()
        tile_d = td_def if tile_d is None else tile_d
        tile_s = ts_def if tile_s is None else tile_s

        f_in_p = _round_up(self.in_size, 128)    # lane-dense feature dims
        f_out_p = _round_up(self.out_size, 128)
        max_nodes = max(num_nodes[nt] for nt in ntypes)
        tile_s_eff = _pick_tile(max_nodes, tile_s)
        ns_pad = _round_up(max_nodes, tile_s_eff)
        type_idx = {nt: i for i, nt in enumerate(ntypes)}

        # deduplicated, padded, bf16 source-feature bank (one copy per ntype).
        # Padded rows are zero -> padded Wh rows equal b_e; cancelled by the
        # zero-padded adjacency columns in the aggregation kernel.
        xs_bank = jnp.stack(
            [_pad2(feat_dict[nt].astype(jnp.bfloat16), (ns_pad, f_in_p))
             for nt in ntypes], axis=0)

        # relations sorted by source ntype -> same-src relations adjacent in
        # the (n_s, R) grid, so their xs block is reused without re-DMA.
        rel_order = sorted(range(len(cets)), key=lambda i: type_idx[cets[i][0]])
        stack_pos = {orig: pos for pos, orig in enumerate(rel_order)}
        srcsel = jnp.array([type_idx[cets[i][0]] for i in rel_order], jnp.int32)
        w_stack = jnp.stack(
            [_pad2(self.w[cets[i][1]].astype(jnp.bfloat16), (f_in_p, f_out_p))
             for i in rel_order], axis=0)
        b_stack = jnp.stack(
            [_pad2(self.b[cets[i][1]], (1, f_out_p)) for i in rel_order], axis=0)
        wh_all = compute_wh(srcsel, xs_bank, w_stack, b_stack, tile_s=tile_s_eff)

        # keep wh_all VMEM-resident in the aggregation kernel when it fits
        # (double-buffered) -> eliminates per-d-tile wh re-reads entirely.
        R = len(cets)
        wh_resident = (R * ns_pad * f_out_p * 2) <= 6 * 2**20

        w0_p = _pad2(self.w0.astype(jnp.bfloat16), (f_in_p, f_out_p))
        b0_p = _pad2(self.b0, (1, f_out_p))

        out = {}
        for dst in ntypes:
            rel_ids = [i for i, c in enumerate(cets) if c[2] == dst]
            if not rel_ids:
                continue  # matches DGL: no 'h' for ntypes with no in-edges
            nd = num_nodes[dst]
            tile_d_eff = _pick_tile(nd, tile_d, keep_two_tiles=True)
            nd_pad = _round_up(nd, tile_d_eff)
            aw_list, inv_list = [], []
            for i in rel_ids:
                s, e, d = cets[i]
                mask = graph["adj"][(s, e, d)].astype(jnp.float32)
                deg = jnp.sum(mask, axis=1, keepdims=True)        # in-degree
                invdeg = jnp.where(deg > 0, 1.0 / jnp.maximum(deg, 1.0), 0.0)
                aw = mask if eweight_dict is None else \
                    mask * eweight_dict[(s, e, d)].astype(jnp.float32)
                aw_list.append(_pad2(aw.astype(jnp.bfloat16), (nd_pad, ns_pad)))
                inv_list.append(_pad2(invdeg, (nd_pad, 1)))
            aw_stack = jnp.stack(aw_list, axis=0)
            inv_stack = jnp.stack(inv_list, axis=0)
            relsel = jnp.array([stack_pos[i] for i in rel_ids], jnp.int32)
            xd_p = _pad2(feat_dict[dst].astype(jnp.bfloat16), (nd_pad, f_in_p))
            h = aggregate_dst(relsel, aw_stack, inv_stack, wh_all,
                              xd_p, w0_p, b0_p,
                              tile_d=tile_d_eff, tile_s=tile_s_eff,
                              wh_resident=wh_resident)
            out[dst] = h[:nd, :self.out_size]
        return out


# Pure-JAX f32 reference (mirrors the DGL semantics) for verification.
def reference_forward(layer, graph, feat_dict, eweight_dict=None):
    out = {}
    for dst in graph["ntypes"]:
        rels = [c for c in graph["canonical_etypes"] if c[2] == dst]
        if not rels:
            continue
        h0 = feat_dict[dst] @ layer.w0 + layer.b0
        agg = jnp.zeros((graph["num_nodes"][dst], layer.out_size), jnp.float32)
        for (s, e, d) in rels:
            Wh = feat_dict[s] @ layer.w[e] + layer.b[e]
            mask = graph["adj"][(s, e, d)].astype(jnp.float32)
            ew = (eweight_dict[(s, e, d)].astype(jnp.float32)
                  if eweight_dict is not None else jnp.ones_like(mask))
            deg = jnp.sum(mask, axis=1, keepdims=True)
            a_norm = jnp.where(deg > 0, (mask * ew) / jnp.maximum(deg, 1.0), 0.0)
            agg = agg + a_norm @ Wh
        out[dst] = agg + h0
    return out


if __name__ == "__main__":
    key = jax.random.PRNGKey(0)
    IN, OUT = 96, 64            # deliberately not multiples of 128 (exercises padding)
    N_USER, N_ITEM = 200, 144   # different per-type node counts (exercises dedup/padding)

    ntypes = ["user", "item"]
    canonical_etypes = [
        ("user", "follows", "user"),
        ("item", "rev-rates", "user"),
        ("user", "rates", "item"),
        ("item", "similar", "item"),
    ]
    etypes = [e for (_, e, _) in canonical_etypes]
    num_nodes = {"user": N_USER, "item": N_ITEM}

    k_feat_u, k_feat_i, k_layer, *k_adj = jax.random.split(
        key, 3 + 2 * len(canonical_etypes))

    feat_dict = {
        "user": jax.random.normal(k_feat_u, (N_USER, IN), jnp.float32),
        "item": jax.random.normal(k_feat_i, (N_ITEM, IN), jnp.float32),
    }

    adj, eweight_dict = {}, {}
    for i, (s, e, d) in enumerate(canonical_etypes):
        shape = (num_nodes[d], num_nodes[s])
        mask = (jax.random.uniform(k_adj[2 * i], shape) < 0.3).astype(jnp.float32)
        adj[(s, e, d)] = mask
        eweight_dict[(s, e, d)] = jax.random.uniform(k_adj[2 * i + 1], shape,
                                                     jnp.float32, 0.5, 1.5)

    graph = {"ntypes": ntypes, "num_nodes": num_nodes,
             "canonical_etypes": canonical_etypes, "adj": adj}

    layer = HeteroRGCNLayerPallas(IN, OUT, etypes, k_layer)

    # with edge weights (u_mul_e + mean) and without (copy_u + mean)
    out_w = layer(graph, feat_dict, eweight_dict)
    out_nw = layer(graph, feat_dict, None)
    jax.block_until_ready(out_w)
    jax.block_until_ready(out_nw)

    ref_w = reference_forward(layer, graph, feat_dict, eweight_dict)
    ref_nw = reference_forward(layer, graph, feat_dict, None)
    # kernel runs bf16 on the MXU with f32 accumulation -> compare with bf16-level tolerance
    for nt in ntypes:
        assert jnp.allclose(out_w[nt], ref_w[nt], atol=5e-2, rtol=5e-2), nt
        assert jnp.allclose(out_nw[nt], ref_nw[nt], atol=5e-2, rtol=5e-2), nt

    print("KERNEL_OK")
</pallas_src>

<mosaic_0001>
module attributes {stable_mosaic.version = 11 : i64} {
  func.func @_wh_kernel(%arg0: i32, %arg1: i32, %arg2: memref<4xi32, #tpu.memory_space<smem>>, %arg3: memref<1x256x128xbf16, #tpu.memory_space<vmem>>, %arg4: memref<1x128x128xbf16, #tpu.memory_space<vmem>>, %arg5: memref<1x1x128xf32, #tpu.memory_space<vmem>>, %arg6: memref<1x256x128xbf16, #tpu.memory_space<vmem>>) attributes {dimension_semantics = [#tpu.dimension_semantics<parallel>, #tpu.dimension_semantics<parallel>], iteration_bounds = array<i64: 1, 4>, scalar_prefetch = 1 : i64, scratch_operands = 0 : i64, tpu.core_type = #tpu.core_type<tc>, window_params = [{transform_indices = @transform_0, window_bounds = array<i64: 1, 256, 128>}, {transform_indices = @transform_1, window_bounds = array<i64: 1, 128, 128>}, {transform_indices = @transform_2, window_bounds = array<i64: 1, 1, 128>}, {transform_indices = @transform_3, window_bounds = array<i64: 1, 256, 128>}]} {
    %c0 = arith.constant 0 : index
    %c0_0 = arith.constant 0 : index
    %c0_1 = arith.constant 0 : index
    %0 = vector.load %arg3[%c0, %c0_0, %c0_1] : memref<1x256x128xbf16, #tpu.memory_space<vmem>>, vector<1x256x128xbf16>
    %1 = vector.shape_cast %0 : vector<1x256x128xbf16> to vector<256x128xbf16>
    %c0_2 = arith.constant 0 : index
    %c0_3 = arith.constant 0 : index
    %c0_4 = arith.constant 0 : index
    %2 = vector.load %arg4[%c0_2, %c0_3, %c0_4] : memref<1x128x128xbf16, #tpu.memory_space<vmem>>, vector<1x128x128xbf16>
    %3 = vector.shape_cast %2 : vector<1x128x128xbf16> to vector<128x128xbf16>
    %cst = arith.constant dense<0.000000e+00> : vector<256x128xf32>
    %4 = tpu.matmul %1, %3, %cst {dimension_numbers = #tpu.dot_dimension_numbers<[1], [0], [0], [1], [0, 0, 1, 1], [], []>} : vector<256x128xbf16>, vector<128x128xbf16>, vector<256x128xf32> -> vector<256x128xf32>
    %c0_5 = arith.constant 0 : index
    %c0_6 = arith.constant 0 : index
    %c0_7 = arith.constant 0 : index
    %5 = vector.load %arg5[%c0_5, %c0_6, %c0_7] : memref<1x1x128xf32, #tpu.memory_space<vmem>>, vector<1x1x128xf32>
    %6 = vector.shape_cast %5 : vector<1x1x128xf32> to vector<1x128xf32>
    %7 = vector.broadcast %6 : vector<1x128xf32> to vector<256x128xf32>
    %8 = arith.addf %4, %7 : vector<256x128xf32>
    %9 = arith.truncf %8 : vector<256x128xf32> to vector<256x128xbf16>
    %c0_8 = arith.constant 0 : index
    %c0_9 = arith.constant 0 : index
    %c0_10 = arith.constant 0 : index
    %10 = vector.load %arg6[%c0_8, %c0_9, %c0_10] : memref<1x256x128xbf16, #tpu.memory_space<vmem>>, vector<1x256x128xbf16>
    %11 = vector.shape_cast %10 : vector<1x256x128xbf16> to vector<256x128xbf16>
    %12 = vector.shape_cast %9 : vector<256x128xbf16> to vector<1x256x128xbf16>
    tpu.vector_store %arg6[%c0_8, %c0_9, %c0_10], %12 {strides = array<i32>} : memref<1x256x128xbf16, #tpu.memory_space<vmem>>, vector<1x256x128xbf16>,
    return
  }
  func.func @transform_0(%arg0: i32, %arg1: i32, %arg2: memref<4xi32, #tpu.memory_space<smem>>) -> (i32, i32, i32) {
    %0 = arith.index_cast %arg1 : i32 to index
    %1 = memref.load %arg2[%0] : memref<4xi32, #tpu.memory_space<smem>>
    %c0_i32 = arith.constant 0 : i32
    %c0_i32_0 = arith.constant 0 : i32
    return %1, %arg0, %c0_i32 : i32, i32, i32
  }
  func.func @transform_1(%arg0: i32, %arg1: i32, %arg2: memref<4xi32, #tpu.memory_space<smem>>) -> (i32, i32, i32) {
    %c0_i32 = arith.constant 0 : i32
    %c0_i32_0 = arith.constant 0 : i32
    %c0_i32_1 = arith.constant 0 : i32
    return %arg1, %c0_i32, %c0_i32_0 : i32, i32, i32
  }
  func.func @transform_2(%arg0: i32, %arg1: i32, %arg2: memref<4xi32, #tpu.memory_space<smem>>) -> (i32, i32, i32) {
    %c0_i32 = arith.constant 0 : i32
    %c0_i32_0 = arith.constant 0 : i32
    %c0_i32_1 = arith.constant 0 : i32
    return %arg1, %c0_i32, %c0_i32_0 : i32, i32, i32
  }
  func.func @transform_3(%arg0: i32, %arg1: i32, %arg2: memref<4xi32, #tpu.memory_space<smem>>) -> (i32, i32, i32) {
    %c0_i32 = arith.constant 0 : i32
    %c0_i32_0 = arith.constant 0 : i32
    return %arg1, %arg0, %c0_i32 : i32, i32, i32
  }
}

</mosaic_0001>

<llo_original>
// kernel: compute_wh.1
$region0: #{compute_wh.1}
  #allocation0 [shape = 'u32[]', space=smem, size = 0x4, offset = 0x4, fixed_abs, tag = 'smem constant byte address 0x4 - core index']
  #allocation1 [shape = 'u32[72,128]{1,0:T(1,128)}', space=vmem, size = 0x9000, scoped, tag = 'internal scratch']
  #allocation2 [shape = 's32[1]{0}', space=sflag, size = 0x4, scoped, tag = 'scoped memory for compute_wh.1']
  #allocation3 [shape = 'u8[512]{0}', space=smem, size = 0x200, scoped, tag = 'prefetched SMEM operand 0']
  %s0 = inlined_call_operand.hbm [shape: s32[4], index: 0, kind: input, shape index: {}]
  %s1 = inlined_call_operand.hbm [shape: bf16[2,256,128], index: 1, kind: input, shape index: {}]
  %s2 = inlined_call_operand.hbm [shape: bf16[4,128,128], index: 2, kind: input, shape index: {}]
  %s3 = inlined_call_operand.hbm [shape: f32[4,1,128], index: 3, kind: input, shape index: {}]
  %s4 = inlined_call_operand.hbm [shape: bf16[4,256,128], index: 4, kind: output, shape index: {}]
  %s5 = sld [smem:[#allocation0]]
  $region57: #{compute_wh.1} parent=0
    _
  %s7 = ssub.s32 1, %s5
  %s8 = scalar_select 0, %s7, %s5
  %s10 = sshll.u32 %s0, 4
  %s11 = int_to_ptr.hbm [resolvable:$true] %s10
  %13 = dma.hbm_to_smem %s11, 16, [#allocation3], [#allocation2]
  %15 = dma.done [#allocation2], 16
  %16 = sfence
  $region1: #{compute_wh.1} parent=0
    #allocation4 [shape = 'u8[131072]{0}', space=vmem, size = 0x20000, scoped, tag = 'input window, operand 1']
    #allocation5 [shape = 's32[2]{0}', space=sflag, size = 0x8, scoped, tag = 'scoped memory for compute_wh.1']
    #allocation6 [shape = 's32[2]{0}', space=sflag, size = 0x8, scoped, tag = 'scoped memory for compute_wh.1']
    #allocation7 [shape = 'u8[65536]{0}', space=vmem, size = 0x10000, scoped, tag = 'input window, operand 2']
    #allocation8 [shape = 's32[2]{0}', space=sflag, size = 0x8, scoped, tag = 'scoped memory for compute_wh.1']
    #allocation9 [shape = 'u8[1024]{0}', space=vmem, size = 0x400, scoped, tag = 'input window, operand 3']
    #allocation10 [shape = 'u8[131072]{0}', space=vmem, size = 0x20000, scoped, tag = 'output window, operand 0']
    %17 = vsyncpa [#allocation5], 0
    %s18 = scalar_lea.sflag [#allocation5], 1
    %19 = vsyncpa %s18, 0
    %20 = vsyncpa [#allocation8], 0
    %s21 = scalar_lea.sflag [#allocation8], 1
    %22 = vsyncpa %s21, 0
    %23 = vsyncpa [#allocation6], 0
    %s24 = scalar_lea.sflag [#allocation6], 1
    %25 = vsyncpa %s24, 0
    loop: start=0, step=1, limit=6
    $region2: #{compute_wh.1} parent=1 // loop_pre_header
      _
    $region3: #{compute_wh.1} parent=1 // loop_header
      %s27 = sphi 0, %s31
      %p28 = scmp.ge.s32.totalorder %s27, 6
      %s34 = sphi 0, %s46
      %s35 = sphi 0, %s42
      %s36 = sphi 0, %s34
      %s37 = sphi 0, %s35
      %s38 = sphi 0, %s36
      %s39 = sphi 0, %s37
      %s53 = sphi 0, %s55
      %s56 = sphi 0, %s53
      %s57 = sphi 0, %s56
      %s73 = sphi 0, %s57
      %s79 = sphi 0, %s81
      %s82 = sphi 0, %s79
      %s83 = sphi 0, %s82
      %s99 = sphi 0, %s83
      %s105 = sphi 0, %s107
      %s108 = sphi 0, %s105
      %s109 = sphi 0, %s108
      %s125 = sphi 0, %s109
      %s133 = sphi 0, %s135
      %s136 = sphi 0, %s133
      %s137 = sphi 0, %s136
      %s153 = sphi 0, %s137
    $region4: #{compute_wh.1} parent=1 // loop_header_branch
      %30 = sbr.rel (%p28) target = $region8
    $region5: #{compute_wh.1} parent=1 // loop_body
      %s32 = ssub.s32 %s27, 1
      %s33 = ssub.s32 %s27, 2
      %s40 = sadd.s32 1, %s35
      %p41 = scmp.ge.s32.totalorder %s40, 4
      %s42 = scalar_select %p41, 0, %s40
      %s43 = sadd.s32 1, %s34
      %s44 = scalar_select %p41, %s43, %s34
      %p45 = scmp.ge.s32.totalorder %s44, 1
      %s46 = scalar_select %p45, 0, %s44
      %s47 = sld [smem:[#allocation3 + %s35]]
      %s48 = sld [smem:[#allocation3 + %s42]]
      %s49 = ssub.s32 %s47, %s48
      %s50 = ssub.s32 %s34, %s46
      %s51 = sor.u32 %s49, %s50
      %p52 = scmp.eq.s32.totalorder %s51, 0
      %s54 = sadd.s32 %s53, 1
      %s55 = scalar_select %p52, %s53, %s54
      %p58 = pneg %p52
      %p59 = scmp.eq.s32.totalorder %s27, 3
      %p60 = por %p58, %p59
      %p61 = scmp.ne.s32.totalorder %s53, %s56
      %p62 = scmp.eq.s32.totalorder %s27, 0
      %p63 = por %p61, %p62
      %p64 = scmp.ne.s32.totalorder %s53, %s56
      %p65 = scmp.eq.s32.totalorder %s32, 3
      %p66 = por %p64, %p65
      %p67 = scmp.ne.s32.totalorder %s56, %s57
      %p68 = scmp.eq.s32.totalorder %s32, 0
      %p69 = por %p67, %p68
      %p70 = scmp.ne.s32.totalorder %s56, %s57
      %p71 = scmp.eq.s32.totalorder %s33, 3
      %p72 = por %p70, %p71
      %p74 = scmp.ne.s32.totalorder %s57, %s73
      %p75 = scmp.eq.s32.totalorder %s33, 0
      %p76 = por %p74, %p75
      %s77 = ssub.s32 %s35, %s42
      %p78 = scmp.eq.s32.totalorder %s77, 0
      %s80 = sadd.s32 %s79, 1
      %s81 = scalar_select %p78, %s79, %s80
      %p84 = pneg %p78
      %p85 = scmp.eq.s32.totalorder %s27, 3
      %p86 = por %p84, %p85
      %p87 = scmp.ne.s32.totalorder %s79, %s82
      %p88 = scmp.eq.s32.totalorder %s27, 0
      %p89 = por %p87, %p88
      %p90 = scmp.ne.s32.totalorder %s79, %s82
      %p91 = scmp.eq.s32.totalorder %s32, 3
      %p92 = por %p90, %p91
      %p93 = scmp.ne.s32.totalorder %s82, %s83
      %p94 = scmp.eq.s32.totalorder %s32, 0
      %p95 = por %p93, %p94
      %p96 = scmp.ne.s32.totalorder %s82, %s83
      %p97 = scmp.eq.s32.totalorder %s33, 3
      %p98 = por %p96, %p97
      %p100 = scmp.ne.s32.totalorder %s83, %s99
      %p101 = scmp.eq.s32.totalorder %s33, 0
      %p102 = por %p100, %p101
      %s103 = ssub.s32 %s35, %s42
      %p104 = scmp.eq.s32.totalorder %s103, 0
      %s106 = sadd.s32 %s105, 1
      %s107 = scalar_select %p104, %s105, %s106
      %p110 = pneg %p104
      %p111 = scmp.eq.s32.totalorder %s27, 3
      %p112 = por %p110, %p111
      %p113 = scmp.ne.s32.totalorder %s105, %s108
      %p114 = scmp.eq.s32.totalorder %s27, 0
      %p115 = por %p113, %p114
      %p116 = scmp.ne.s32.totalorder %s105, %s108
      %p117 = scmp.eq.s32.totalorder %s32, 3
      %p118 = por %p116, %p117
      %p119 = scmp.ne.s32.totalorder %s108, %s109
      %p120 = scmp.eq.s32.totalorder %s32, 0
      %p121 = por %p119, %p120
      %p122 = scmp.ne.s32.totalorder %s108, %s109
      %p123 = scmp.eq.s32.totalorder %s33, 3
      %p124 = por %p122, %p123
      %p126 = scmp.ne.s32.totalorder %s109, %s125
      %p127 = scmp.eq.s32.totalorder %s33, 0
      %p128 = por %p126, %p127
      %s129 = ssub.s32 %s35, %s42
      %s130 = ssub.s32 %s34, %s46
      %s131 = sor.u32 %s129, %s130
      %p132 = scmp.eq.s32.totalorder %s131, 0
      %s134 = sadd.s32 %s133, 1
      %s135 = scalar_select %p132, %s133, %s134
      %p138 = pneg %p132
      %p139 = scmp.eq.s32.totalorder %s27, 3
      %p140 = por %p138, %p139
      %p141 = scmp.ne.s32.totalorder %s133, %s136
      %p142 = scmp.eq.s32.totalorder %s27, 0
      %p143 = por %p141, %p142
      %p144 = scmp.ne.s32.totalorder %s133, %s136
      %p145 = scmp.eq.s32.totalorder %s32, 3
      %p146 = por %p144, %p145
      %p147 = scmp.ne.s32.totalorder %s136, %s137
      %p148 = scmp.eq.s32.totalorder %s32, 0
      %p149 = por %p147, %p148
      %p150 = scmp.ne.s32.totalorder %s136, %s137
      %p151 = scmp.eq.s32.totalorder %s33, 3
      %p152 = por %p150, %p151
      %p154 = scmp.ne.s32.totalorder %s137, %s153
      %p155 = scmp.eq.s32.totalorder %s33, 0
      %p156 = por %p154, %p155
      %p157 = scmp.le.s32.totalorder 1, %s27
      %p158 = scmp.lt.s32.totalorder %s27, 5
      %p159 = pnand %p157, %p158
      %p160 = pneg %p159
      // Predicated region
      $region9: #{compute_wh.1} parent=5 // pred_check
        _
      $region10: #{compute_wh.1} parent=5 // pred_check_branch
        %162 = sbr.rel (%p159) target = $region12
      $region11: #{compute_wh.1} parent=5 // pred_region
        %s163 = ssub.s32 %s27, 1
      $region12: #{compute_wh.1} parent=5 // pred_fallthru
        _
      %p164 = scmp.lt.s32.totalorder %s27, 4
      // Predicated region
      $region13: #{compute_wh.1} parent=5 // pred_check
        %p165 = pneg %p164
      $region14: #{compute_wh.1} parent=5 // pred_check_branch
        %167 = sbr.rel (%p165) target = $region16
      $region15: #{compute_wh.1} parent=5 // pred_region
        // Predicated region
        $region17: #{compute_wh.1} parent=15 // pred_check
          %p168 = pneg %p63
        $region18: #{compute_wh.1} parent=15 // pred_check_branch
          %170 = sbr.rel (%p168) target = $region20
        $region19: #{compute_wh.1} parent=15 // pred_region
          %s171 = sand.u32 %s53, 1
          %s172 = scalar_lea.sflag [#allocation5], %s171
          %s173 = sand.u32 %s53, 1
          %s174 = smul.addr %s173, 128
          %s175 = scalar_lea.vmem [#allocation4], %s174
          %s176 = sld [smem:[#allocation3 + %s35]]
          %s177 = smul.u32 32, %s34
          %179 = vsyncadd %s172, 0
          %s180 = smul.addr %s176, 32
          %s181 = sadd.s32 %s177, %s180
          %s182 = smul.addr %s181, 4
          %s183 = scalar_lea.hbm %s1, %s182
          %s184 = sshll.u32 %s183, 4
          %s185 = int_to_ptr.hbm [resolvable:$true] %s184
          %s186 = sshll.u32 %s175, 4
          %s187 = int_to_ptr.vmem [resolvable:$true] %s186
          %192 = dma.hbm_to_vmem [thread:$0]  %s185, 2048, %s187, %s172, 64, 64, 4
        $region20: #{compute_wh.1} parent=15 // pred_fallthru
          _
        // Predicated region
        $region21: #{compute_wh.1} parent=15 // pred_check
          %p193 = pneg %p89
        $region22: #{compute_wh.1} parent=15 // pred_check_branch
          %195 = sbr.rel (%p193) target = $region24
        $region23: #{compute_wh.1} parent=15 // pred_region
          %s196 = sand.u32 %s27, 1
          %s197 = scalar_lea.sflag [#allocation8], %s196
          %s198 = sand.u32 %s79, 1
          %s199 = smul.addr %s198, 64
          %s200 = scalar_lea.vmem [#allocation7], %s199
          %202 = vsyncadd %s197, 0
          %s203 = smul.addr %s35, 16
          %s204 = smul.addr %s203, 4
          %s205 = scalar_lea.hbm %s2, %s204
          %s206 = sshll.u32 %s205, 4
          %s207 = int_to_ptr.hbm [resolvable:$true] %s206
          %s208 = sshll.u32 %s200, 4
          %s209 = int_to_ptr.vmem [resolvable:$true] %s208
          %214 = dma.hbm_to_vmem [thread:$0]  %s207, 1024, %s209, %s197, 64, 64, 4
        $region24: #{compute_wh.1} parent=15 // pred_fallthru
          _
        // Predicated region
        $region25: #{compute_wh.1} parent=15 // pred_check
          %p215 = pneg %p115
        $region26: #{compute_wh.1} parent=15 // pred_check_branch
          %217 = sbr.rel (%p215) target = $region28
        $region27: #{compute_wh.1} parent=15 // pred_region
          %s218 = sand.u32 %s27, 1
          %s219 = scalar_lea.sflag [#allocation8], %s218
          %s220 = sand.u32 %s105, 1
          %s221 = scalar_lea.vmem [#allocation9], %s220
          %223 = vsyncadd %s219, 0
          %s224 = scalar_lea.hbm %s3, %s35
          %s226 = sshll.u32 %s224, 4
          %s227 = int_to_ptr.hbm [resolvable:$true] %s226
          %s228 = sshll.u32 %s221, 4
          %s229 = int_to_ptr.vmem [resolvable:$true] %s228
          %231 = dma.hbm_to_vmem [thread:$0]  %s227, 16, %s229, %s219
        $region28: #{compute_wh.1} parent=15 // pred_fallthru
          _
      $region16: #{compute_wh.1} parent=5 // pred_fallthru
        _
      %p232 = scmp.le.s32.totalorder 1, %s27
      %p233 = scmp.lt.s32.totalorder %s27, 5
      %p234 = pnand %p232, %p233
      %p235 = pneg %p234
      // Predicated region
      $region29: #{compute_wh.1} parent=5 // pred_check
        _
      $region30: #{compute_wh.1} parent=5 // pred_check_branch
        %237 = sbr.rel (%p234) target = $region32
      $region31: #{compute_wh.1} parent=5 // pred_region
        %s238 = ssub.s32 %s27, 1
        %s239 = sand.u32 %s56, 1
        %s240 = scalar_lea.sflag [#allocation5], %s239
        %s241 = sand.u32 %s56, 1
        %s242 = smul.addr %s241, 128
        %s243 = scalar_lea.vmem [#allocation4], %s242
        // Predicated region
        $region33: #{compute_wh.1} parent=31 // pred_check
          %p244 = pneg %p69
        $region34: #{compute_wh.1} parent=31 // pred_check_branch
          %246 = sbr.rel (%p244) target = $region36
        $region35: #{compute_wh.1} parent=31 // pred_region
          %248 = dma.done %s240, 2048
        $region36: #{compute_wh.1} parent=31 // pred_fallthru
          _
        %s249 = sand.u32 %s32, 1
        %s250 = scalar_lea.sflag [#allocation8], %s249
        %s251 = sand.u32 %s82, 1
        %s252 = smul.addr %s251, 64
        %s253 = scalar_lea.vmem [#allocation7], %s252
        // Predicated region
        $region37: #{compute_wh.1} parent=31 // pred_check
          %p254 = pneg %p95
        $region38: #{compute_wh.1} parent=31 // pred_check_branch
          %256 = sbr.rel (%p254) target = $region40
        $region39: #{compute_wh.1} parent=31 // pred_region
          %258 = dma.done %s250, 1024
        $region40: #{compute_wh.1} parent=31 // pred_fallthru
          _
        %s259 = sand.u32 %s32, 1
        %s260 = scalar_lea.sflag [#allocation8], %s259
        %s261 = sand.u32 %s108, 1
        %s262 = scalar_lea.vmem [#allocation9], %s261
        // Predicated region
        $region41: #{compute_wh.1} parent=31 // pred_check
          %p263 = pneg %p121
        $region42: #{compute_wh.1} parent=31 // pred_check_branch
          %265 = sbr.rel (%p263) target = $region44
        $region43: #{compute_wh.1} parent=31 // pred_region
          %267 = dma.done %s260, 16
        $region44: #{compute_wh.1} parent=31 // pred_fallthru
          _
        %s268 = sand.u32 %s56, 1
        %s269 = scalar_lea.sflag [#allocation5], %s268
        %s270 = sand.u32 %s56, 1
        %s271 = smul.addr %s270, 128
        %s272 = scalar_lea.vmem [#allocation4], %s271
        %p273 = pneg %p69
        %p274 = pneg %p66
        %s275 = sand.u32 %s32, 1
        %s276 = scalar_lea.sflag [#allocation8], %s275
        %s277 = sand.u32 %s82, 1
        %s278 = smul.addr %s277, 64
        %s279 = scalar_lea.vmem [#allocation7], %s278
        %p280 = pneg %p95
        %p281 = pneg %p92
        %s282 = sand.u32 %s32, 1
        %s283 = scalar_lea.sflag [#allocation8], %s282
        %s284 = sand.u32 %s108, 1
        %s285 = scalar_lea.vmem [#allocation9], %s284
        %p286 = pneg %p121
        %p287 = pneg %p118
        %p288 = pneg %p149
        %p289 = pneg %p146
        %s290 = sand.u32 %s136, 1
        %s291 = scalar_lea.sflag [#allocation6], %s290
        %s292 = sand.u32 %s136, 1
        %s293 = smul.addr %s292, 128
        %s294 = scalar_lea.vmem [#allocation10], %s293
        %s295 = sld [smem:[#allocation3 + %s37]]
        %s296 = smul.u32 32, %s36
        %s297 = smul.u32 32, %s36
        %v298 = vld [vmem:[%s243] sm:$0xf]
        %v299 = vld [vmem:[%s243 + $0x4] sm:$0xf]
        %v300 = vld [vmem:[%s243 + $0x8] sm:$0xf]
        %v301 = vld [vmem:[%s243 + $0xc] sm:$0xf]
        %v302 = vld [vmem:[%s243 + $0x10] sm:$0xf]
        %v303 = vld [vmem:[%s243 + $0x14] sm:$0xf]
        %v304 = vld [vmem:[%s243 + $0x18] sm:$0xf]
        %v305 = vld [vmem:[%s243 + $0x1c] sm:$0xf]
        %v306 = vld [vmem:[%s243 + $0x20] sm:$0xf]
        %v307 = vld [vmem:[%s243 + $0x24] sm:$0xf]
        %v308 = vld [vmem:[%s243 + $0x28] sm:$0xf]
        %v309 = vld [vmem:[%s243 + $0x2c] sm:$0xf]
        %v310 = vld [vmem:[%s243 + $0x30] sm:$0xf]
        %v311 = vld [vmem:[%s243 + $0x34] sm:$0xf]
        %v312 = vld [vmem:[%s243 + $0x38] sm:$0xf]
        %v313 = vld [vmem:[%s243 + $0x3c] sm:$0xf]
        %v314 = vld [vmem:[%s243 + $0x40] sm:$0xf]
        %v315 = vld [vmem:[%s243 + $0x44] sm:$0xf]
        %v316 = vld [vmem:[%s243 + $0x48] sm:$0xf]
        %v317 = vld [vmem:[%s243 + $0x4c] sm:$0xf]
        %v318 = vld [vmem:[%s243 + $0x50] sm:$0xf]
        %v319 = vld [vmem:[%s243 + $0x54] sm:$0xf]
        %v320 = vld [vmem:[%s243 + $0x58] sm:$0xf]
        %v321 = vld [vmem:[%s243 + $0x5c] sm:$0xf]
        %v322 = vld [vmem:[%s243 + $0x60] sm:$0xf]
        %v323 = vld [vmem:[%s243 + $0x64] sm:$0xf]
        %v324 = vld [vmem:[%s243 + $0x68] sm:$0xf]
        %v325 = vld [vmem:[%s243 + $0x6c] sm:$0xf]
        %v326 = vld [vmem:[%s243 + $0x70] sm:$0xf]
        %v327 = vld [vmem:[%s243 + $0x74] sm:$0xf]
        %v328 = vld [vmem:[%s243 + $0x78] sm:$0xf]
        %v329 = vld [vmem:[%s243 + $0x7c] sm:$0xf]
        %v330 = vld [vmem:[%s253] sm:$0xf]
        %v331 = vld [vmem:[%s253 + $0x4] sm:$0xf]
        %v332 = vld [vmem:[%s253 + $0x8] sm:$0xf]
        %v333 = vld [vmem:[%s253 + $0xc] sm:$0xf]
        %v334 = vld [vmem:[%s253 + $0x10] sm:$0xf]
        %v335 = vld [vmem:[%s253 + $0x14] sm:$0xf]
        %v336 = vld [vmem:[%s253 + $0x18] sm:$0xf]
        %v337 = vld [vmem:[%s253 + $0x1c] sm:$0xf]
        %v338 = vld [vmem:[%s253 + $0x20] sm:$0xf]
        %v339 = vld [vmem:[%s253 + $0x24] sm:$0xf]
        %v340 = vld [vmem:[%s253 + $0x28] sm:$0xf]
        %v341 = vld [vmem:[%s253 + $0x2c] sm:$0xf]
        %v342 = vld [vmem:[%s253 + $0x30] sm:$0xf]
        %v343 = vld [vmem:[%s253 + $0x34] sm:$0xf]
        %v344 = vld [vmem:[%s253 + $0x38] sm:$0xf]
        %v345 = vld [vmem:[%s253 + $0x3c] sm:$0xf]
        %v346 = vld [vmem:[%s262] sm:$0x1]
        %v348 = vperm.slane %v346, 0
        %v382 = vunpack.c.l.b16 %v298
        %v383 = vunpack.c.l.b16 %v299
        %v384 = vunpack.c.l.b16 %v300
        %v385 = vunpack.c.l.b16 %v301
        %v386 = vunpack.c.l.b16 %v302
        %v387 = vunpack.c.l.b16 %v303
        %v388 = vunpack.c.l.b16 %v304
        %v389 = vunpack.c.l.b16 %v305
        %v390 = vunpack.c.l.b16 %v306
        %v391 = vunpack.c.l.b16 %v307
        %v392 = vunpack.c.l.b16 %v308
        %v393 = vunpack.c.l.b16 %v309
        %v394 = vunpack.c.l.b16 %v310
        %v395 = vunpack.c.l.b16 %v311
        %v396 = vunpack.c.l.b16 %v312
        %v397 = vunpack.c.l.b16 %v313
        %v398 = vunpack.c.l.b16 %v314
        %v399 = vunpack.c.l.b16 %v315
        %v400 = vunpack.c.l.b16 %v316
        %v401 = vunpack.c.l.b16 %v317
        %v402 = vunpack.c.l.b16 %v318
        %v403 = vunpack.c.l.b16 %v319
        %v404 = vunpack.c.l.b16 %v320
        %v405 = vunpack.c.l.b16 %v321
        %v406 = vunpack.c.l.b16 %v322
        %v407 = vunpack.c.l.b16 %v323
        %v408 = vunpack.c.l.b16 %v324
        %v409 = vunpack.c.l.b16 %v325
        %v410 = vunpack.c.l.b16 %v326
        %v411 = vunpack.c.l.b16 %v327
        %v412 = vunpack.c.l.b16 %v328
        %v413 = vunpack.c.l.b16 %v329
        %v414 = vpack.c.b16 %v383, %v382
        %v415 = vpack.c.b16 %v385, %v384
        %v416 = vpack.c.b16 %v387, %v386
        %v417 = vpack.c.b16 %v389, %v388
        %v418 = vpack.c.b16 %v391, %v390
        %v419 = vpack.c.b16 %v393, %v392
        %v420 = vpack.c.b16 %v395, %v394
        %v421 = vpack.c.b16 %v397, %v396
        %v422 = vpack.c.b16 %v399, %v398
        %v423 = vpack.c.b16 %v401, %v400
        %v424 = vpack.c.b16 %v403, %v402
        %v425 = vpack.c.b16 %v405, %v404
        %v426 = vpack.c.b16 %v407, %v406
        %v427 = vpack.c.b16 %v409, %v408
        %v428 = vpack.c.b16 %v411, %v410
        %v429 = vpack.c.b16 %v413, %v412
        %v462 = vunpack.c.l.b16 %v330
        %v463 = vunpack.c.l.b16 %v331
        %v464 = vunpack.c.l.b16 %v332
        %v465 = vunpack.c.l.b16 %v333
        %v466 = vunpack.c.l.b16 %v334
        %v467 = vunpack.c.l.b16 %v335
        %v468 = vunpack.c.l.b16 %v336
        %v469 = vunpack.c.l.b16 %v337
        %v470 = vunpack.c.l.b16 %v338
        %v471 = vunpack.c.l.b16 %v339
        %v472 = vunpack.c.l.b16 %v340
        %v473 = vunpack.c.l.b16 %v341
        %v474 = vunpack.c.l.b16 %v342
        %v475 = vunpack.c.l.b16 %v343
        %v476 = vunpack.c.l.b16 %v344
        %v477 = vunpack.c.l.b16 %v345
        %v478 = vpack.c.b16 %v463, %v462
        %v479 = vpack.c.b16 %v465, %v464
        %v480 = vpack.c.b16 %v467, %v466
        %v481 = vpack.c.b16 %v469, %v468
        %v482 = vpack.c.b16 %v471, %v470
        %v483 = vpack.c.b16 %v473, %v472
        %v484 = vpack.c.b16 %v475, %v474
        %v485 = vpack.c.b16 %v477, %v476
        %494 = vmatpush.bf16.msra.mxu0 %v485
        %495 = vmatpush.bf16.msra.mxu0 %v484
        %496 = vmatpush.bf16.msra.mxu0 %v483
        %497 = vmatpush.bf16.msra.mxu0 %v482
        %498 = vmatpush.bf16.msra.mxu0 %v481
        %499 = vmatpush.bf16.msra.mxu0 %v480
        %500 = vmatpush.bf16.msra.mxu0 %v479
        %501 = vmatpush.bf16.msra.mxu0 %v478
        %502 = vmatmul.bf16.gmra.mxu0 %v414
        %v503 = vpop.f32.mrf.mxu0
        %v504 = vadd.f32 %v348, %v503
        %v505 = vpop.f32.mrf.mxu0
        %v506 = vadd.f32 %v348, %v505
        %507 = vmatmul.bf16.gmra.mxu0 %v415
        %v508 = vpop.f32.mrf.mxu0
        %v509 = vadd.f32 %v348, %v508
        %v510 = vpop.f32.mrf.mxu0
        %v511 = vadd.f32 %v348, %v510
        %512 = vmatmul.bf16.gmra.mxu0 %v416
        %v513 = vpop.f32.mrf.mxu0
        %v514 = vadd.f32 %v348, %v513
        %v515 = vpop.f32.mrf.mxu0
        %v516 = vadd.f32 %v348, %v515
        %517 = vmatmul.bf16.gmra.mxu0 %v417
        %v518 = vpop.f32.mrf.mxu0
        %v519 = vadd.f32 %v348, %v518
        %v520 = vpop.f32.mrf.mxu0
        %v521 = vadd.f32 %v348, %v520
        %522 = vmatmul.bf16.gmra.mxu0 %v418
        %v523 = vpop.f32.mrf.mxu0
        %v524 = vadd.f32 %v348, %v523
        %v525 = vpop.f32.mrf.mxu0
        %v526 = vadd.f32 %v348, %v525
        %527 = vmatmul.bf16.gmra.mxu0 %v419
        %v528 = vpop.f32.mrf.mxu0
        %v529 = vadd.f32 %v348, %v528
        %v530 = vpop.f32.mrf.mxu0
        %v531 = vadd.f32 %v348, %v530
        %532 = vmatmul.bf16.gmra.mxu0 %v420
        %v533 = vpop.f32.mrf.mxu0
        %v534 = vadd.f32 %v348, %v533
        %v535 = vpop.f32.mrf.mxu0
        %v536 = vadd.f32 %v348, %v535
        %537 = vmatmul.bf16.gmra.mxu0 %v421
        %v538 = vpop.f32.mrf.mxu0
        %v539 = vadd.f32 %v348, %v538
        %v540 = vpop.f32.mrf.mxu0
        %v541 = vadd.f32 %v348, %v540
        %542 = vmatmul.bf16.gmra.mxu0 %v422
        %v543 = vpop.f32.mrf.mxu0
        %v544 = vadd.f32 %v348, %v543
        %v545 = vpop.f32.mrf.mxu0
        %v546 = vadd.f32 %v348, %v545
        %547 = vmatmul.bf16.gmra.mxu0 %v423
        %v548 = vpop.f32.mrf.mxu0
        %v549 = vadd.f32 %v348, %v548
        %v550 = vpop.f32.mrf.mxu0
        %v551 = vadd.f32 %v348, %v550
        %552 = vmatmul.bf16.gmra.mxu0 %v424
        %v553 = vpop.f32.mrf.mxu0
        %v554 = vadd.f32 %v348, %v553
        %v555 = vpop.f32.mrf.mxu0
        %v556 = vadd.f32 %v348, %v555
        %557 = vmatmul.bf16.gmra.mxu0 %v425
        %v558 = vpop.f32.mrf.mxu0
        %v559 = vadd.f32 %v348, %v558
        %v560 = vpop.f32.mrf.mxu0
        %v561 = vadd.f32 %v348, %v560
        %562 = vmatmul.bf16.gmra.mxu0 %v426
        %v563 = vpop.f32.mrf.mxu0
        %v564 = vadd.f32 %v348, %v563
        %v565 = vpop.f32.mrf.mxu0
        %v566 = vadd.f32 %v348, %v565
        %567 = vmatmul.bf16.gmra.mxu0 %v427
        %v568 = vpop.f32.mrf.mxu0
        %v569 = vadd.f32 %v348, %v568
        %v570 = vpop.f32.mrf.mxu0
        %v571 = vadd.f32 %v348, %v570
        %572 = vmatmul.bf16.gmra.mxu0 %v428
        %v573 = vpop.f32.mrf.mxu0
        %v574 = vadd.f32 %v348, %v573
        %v575 = vpop.f32.mrf.mxu0
        %v576 = vadd.f32 %v348, %v575
        %577 = vmatmul.bf16.gmra.mxu0 %v429
        %v578 = vpop.f32.mrf.mxu0
        %v579 = vadd.f32 %v348, %v578
        %v580 = vpop.f32.mrf.mxu0
        %v581 = vadd.f32 %v348, %v580
        %582 = vdwg.mxu0
        %v583 = vpack.c.bf16 %v504, %v504
        %v584 = vpack.c.bf16 %v506, %v506
        %v585 = vpack.c.bf16 %v509, %v509
        %v586 = vpack.c.bf16 %v511, %v511
        %v587 = vpack.c.bf16 %v514, %v514
        %v588 = vpack.c.bf16 %v516, %v516
        %v589 = vpack.c.bf16 %v519, %v519
        %v590 = vpack.c.bf16 %v521, %v521
        %v591 = vpack.c.bf16 %v524, %v524
        %v592 = vpack.c.bf16 %v526, %v526
        %v593 = vpack.c.bf16 %v529, %v529
        %v594 = vpack.c.bf16 %v531, %v531
        %v595 = vpack.c.bf16 %v534, %v534
        %v596 = vpack.c.bf16 %v536, %v536
        %v597 = vpack.c.bf16 %v539, %v539
        %v598 = vpack.c.bf16 %v541, %v541
        %v599 = vpack.c.bf16 %v544, %v544
        %v600 = vpack.c.bf16 %v546, %v546
        %v601 = vpack.c.bf16 %v549, %v549
        %v602 = vpack.c.bf16 %v551, %v551
        %v603 = vpack.c.bf16 %v554, %v554
        %v604 = vpack.c.bf16 %v556, %v556
        %v605 = vpack.c.bf16 %v559, %v559
        %v606 = vpack.c.bf16 %v561, %v561
        %v607 = vpack.c.bf16 %v564, %v564
        %v608 = vpack.c.bf16 %v566, %v566
        %v609 = vpack.c.bf16 %v569, %v569
        %v610 = vpack.c.bf16 %v571, %v571
        %v611 = vpack.c.bf16 %v574, %v574
        %v612 = vpack.c.bf16 %v576, %v576
        %v613 = vpack.c.bf16 %v579, %v579
        %v614 = vpack.c.bf16 %v581, %v581
        %615 = vst [vmem:[%s294] sm:$0xf] %v583
        %616 = vst [vmem:[%s294 + $0x4] sm:$0xf] %v584
        %617 = vst [vmem:[%s294 + $0x8] sm:$0xf] %v585
        %618 = vst [vmem:[%s294 + $0xc] sm:$0xf] %v586
        %619 = vst [vmem:[%s294 + $0x10] sm:$0xf] %v587
        %620 = vst [vmem:[%s294 + $0x14] sm:$0xf] %v588
        %621 = vst [vmem:[%s294 + $0x18] sm:$0xf] %v589
        %622 = vst [vmem:[%s294 + $0x1c] sm:$0xf] %v590
        %623 = vst [vmem:[%s294 + $0x20] sm:$0xf] %v591
        %624 = vst [vmem:[%s294 + $0x24] sm:$0xf] %v592
        %625 = vst [vmem:[%s294 + $0x28] sm:$0xf] %v593
        %626 = vst [vmem:[%s294 + $0x2c] sm:$0xf] %v594
        %627 = vst [vmem:[%s294 + $0x30] sm:$0xf] %v595
        %628 = vst [vmem:[%s294 + $0x34] sm:$0xf] %v596
        %629 = vst [vmem:[%s294 + $0x38] sm:$0xf] %v597
        %630 = vst [vmem:[%s294 + $0x3c] sm:$0xf] %v598
        %631 = vst [vmem:[%s294 + $0x40] sm:$0xf] %v599
        %632 = vst [vmem:[%s294 + $0x44] sm:$0xf] %v600
        %633 = vst [vmem:[%s294 + $0x48] sm:$0xf] %v601
        %634 = vst [vmem:[%s294 + $0x4c] sm:$0xf] %v602
        %635 = vst [vmem:[%s294 + $0x50] sm:$0xf] %v603
        %636 = vst [vmem:[%s294 + $0x54] sm:$0xf] %v604
        %637 = vst [vmem:[%s294 + $0x58] sm:$0xf] %v605
        %638 = vst [vmem:[%s294 + $0x5c] sm:$0xf] %v606
        %639 = vst [vmem:[%s294 + $0x60] sm:$0xf] %v607
        %640 = vst [vmem:[%s294 + $0x64] sm:$0xf] %v608
        %641 = vst [vmem:[%s294 + $0x68] sm:$0xf] %v609
        %642 = vst [vmem:[%s294 + $0x6c] sm:$0xf] %v610
        %643 = vst [vmem:[%s294 + $0x70] sm:$0xf] %v611
        %644 = vst [vmem:[%s294 + $0x74] sm:$0xf] %v612
        %645 = vst [vmem:[%s294 + $0x78] sm:$0xf] %v613
        %646 = vst [vmem:[%s294 + $0x7c] sm:$0xf] %v614
        %s647 = sand.u32 %s136, 1
        %s648 = scalar_lea.sflag [#allocation6], %s647
        %s649 = sand.u32 %s136, 1
        %s650 = smul.addr %s649, 128
        %s651 = scalar_lea.vmem [#allocation10], %s650
        // Predicated region
        $region45: #{compute_wh.1} parent=31 // pred_check
          %p652 = pneg %p146
        $region46: #{compute_wh.1} parent=31 // pred_check_branch
          %654 = sbr.rel (%p652) target = $region48
        $region47: #{compute_wh.1} parent=31 // pred_region
          %s655 = smul.u32 32, %s36
          %657 = vsyncadd %s648, 0
          %s658 = smul.addr %s37, 32
          %s659 = sadd.s32 %s655, %s658
          %s660 = smul.addr %s659, 4
          %s661 = scalar_lea.hbm %s4, %s660
          %s662 = sshll.u32 %s651, 4
          %s663 = int_to_ptr.vmem [resolvable:$true] %s662
          %s664 = sshll.u32 %s661, 4
          %s665 = int_to_ptr.hbm [resolvable:$true] %s664
          %670 = dma.vmem_to_hbm [thread:$0]  %s663, 2048, %s665, %s648, 64, 64, 4
        $region48: #{compute_wh.1} parent=31 // pred_fallthru
          _
      $region32: #{compute_wh.1} parent=5 // pred_fallthru
        _
      %p671 = scmp.le.s32.totalorder 2, %s27
      // Predicated region
      $region49: #{compute_wh.1} parent=5 // pred_check
        %p672 = pneg %p671
      $region50: #{compute_wh.1} parent=5 // pred_check_branch
        %674 = sbr.rel (%p672) target = $region52
      $region51: #{compute_wh.1} parent=5 // pred_region
        %s675 = ssub.s32 %s27, 2
        // Predicated region
        $region53: #{compute_wh.1} parent=51 // pred_check
          %p676 = pneg %p152
        $region54: #{compute_wh.1} parent=51 // pred_check_branch
          %678 = sbr.rel (%p676) target = $region56
        $region55: #{compute_wh.1} parent=51 // pred_region
          %s679 = sand.u32 %s137, 1
          %s680 = scalar_lea.sflag [#allocation6], %s679
          %s681 = sand.u32 %s137, 1
          %s682 = smul.addr %s681, 128
          %s683 = scalar_lea.vmem [#allocation10], %s682
          %685 = dma.done %s680, 2048
        $region56: #{compute_wh.1} parent=51 // pred_fallthru
          _
      $region52: #{compute_wh.1} parent=5 // pred_fallthru
        _
    $region6: #{compute_wh.1} parent=1 // loop_footer
      %s31 = sadd.s32 1, %s27
    $region7: #{compute_wh.1} parent=1 // loop_footer_branch
      %26 = sbr.rel target = $region3
    $region8: #{compute_wh.1} parent=1 // loop_exit
      _
    %686 = vsyncpa [#allocation5], 1
    %s687 = scalar_lea.sflag [#allocation5], 1
    %688 = vsyncpa %s687, 1
    %689 = vsyncpa [#allocation8], 1
    %s690 = scalar_lea.sflag [#allocation8], 1
    %691 = vsyncpa %s690, 1
    %692 = vsyncpa [#allocation6], 1
    %s693 = scalar_lea.sflag [#allocation6], 1
    %694 = vsyncpa %s693, 1

</llo_original>
